<compile_context>
chip_gen: v7x
topology: tpu7x:2x2x1
jax: 0.10.0
libtpu: 0.0.40
codegen_flags: <defaults>
</compile_context>

<pallas_src>
import jax
import jax.numpy as jnp
from jax import lax
from jax.experimental import pallas as pl
from jax.experimental.pallas import tpu as pltpu


def _resblock_kernel(p_ref, w_ref, b_ref, o_ref):
    # p_ref : (K, m)     im2col patches, transposed. K = 9*Cin, m = lane tile.
    # w_ref : (Cout, K)  fused weight (1x1 shortcut folded into 3x3 center tap),
    #                    tap-major along K: index [co, (dh*3+dw)*Cin + c].
    # b_ref : (Cout, 1)  fused bias (b3 + b1), f32.
    # o_ref : (Cout, m)  lane-dense output tile.
    acc = jnp.dot(w_ref[...], p_ref[...],
                  preferred_element_type=jnp.float32)          # (Cout, m) f32
    acc = acc + b_ref[...]                                     # broadcast lanes
    o_ref[...] = jnp.maximum(acc, 0.0).astype(o_ref.dtype)


def residual_block(x_nchw, w3, b3, w1, b1, *,
                   matmul_dtype=jnp.bfloat16, out_dtype=None, m_tile=None):
    """relu(conv3x3_pad1(x) + conv1x1(x)) as one fused Pallas matmul.

    x_nchw: (N, Cin, H, W); w3: (Cout, Cin, 3, 3); w1: (Cout, Cin, 1, 1).
    matmul_dtype: dtype of the MXU operands (default bf16; None = exact f32).
                  Accumulation, bias add and ReLU are always f32.
    out_dtype:    output dtype (default: x dtype).
    m_tile:       optional lane-tile size (multiple of 128) to split N*H*W
                  across grid steps ("parallel"); default is one merged step.
    """
    N, Cin, H, W = x_nchw.shape
    Cout = w3.shape[0]
    K = 9 * Cin
    M = N * H * W
    out_dtype = x_nchw.dtype if out_dtype is None else out_dtype

    # ---- glue (XLA side, negligible at these shapes) ------------------------
    # relu(conv3(x)+b3 + conv1(x)+b1) == relu(conv3'(x) + (b3+b1)) where conv3'
    # has w1 added to its center tap (dh=1, dw=1). Exact fusion.
    w3f = w3.at[:, :, 1, 1].add(w1[:, :, 0, 0])
    # (Cout,Cin,3,3) -> (Cout,3,3,Cin) -> (Cout, 9*Cin); index [co, t*Cin + c]
    # with t = dh*3+dw, matching the im2col row ordering below.
    wmat = jnp.transpose(w3f, (0, 2, 3, 1)).reshape(Cout, K)
    bvec = (b3 + b1).reshape(Cout, 1).astype(jnp.float32)

    # im2col with the batch merged into the lane axis: (9*Cin, N*H*W).
    # Row index  = t*Cin + c   (tap-major, matches wmat)
    # Col index  = n*H*W + h*W + w
    xpad = jnp.pad(x_nchw, ((0, 0), (0, 0), (1, 1), (1, 1)))
    taps = [lax.slice(xpad, (0, 0, dh, dw), (N, Cin, dh + H, dw + W))
            for dh in range(3) for dw in range(3)]              # 9 x (N,Cin,H,W)
    patches = jnp.transpose(jnp.stack(taps, axis=0),            # (9,N,Cin,H,W)
                            (0, 2, 1, 3, 4)).reshape(K, M)      # (K, N*H*W)

    if matmul_dtype is not None:
        patches = patches.astype(matmul_dtype)
        wmat = wmat.astype(matmul_dtype)

    # Default: single merged grid step (overhead-bound regime). m_tile splits
    # the lane axis for megacore / scaled-up shapes.
    if m_tile is None or m_tile >= M:
        m_tile = M
    assert M % m_tile == 0, "m_tile must divide N*H*W"
    n_steps = M // m_tile

    in_itemsize = jnp.dtype(patches.dtype).itemsize
    cost = pl.CostEstimate(
        flops=2 * Cout * K * M,
        transcendentals=0,
        bytes_accessed=(patches.size * in_itemsize
                        + wmat.size * in_itemsize
                        + bvec.size * 4
                        + Cout * M * jnp.dtype(out_dtype).itemsize),
    )

    out = pl.pallas_call(
        _resblock_kernel,
        out_shape=jax.ShapeDtypeStruct((Cout, M), out_dtype),
        grid=(n_steps,),
        in_specs=[
            pl.BlockSpec((K, m_tile), lambda j: (0, j)),
            pl.BlockSpec((Cout, K), lambda j: (0, 0)),
            pl.BlockSpec((Cout, 1), lambda j: (0, 0)),
        ],
        out_specs=pl.BlockSpec((Cout, m_tile), lambda j: (0, j)),
        cost_estimate=cost,
        compiler_params=pltpu.CompilerParams(
            dimension_semantics=("parallel",)),
    )(patches, wmat, bvec)

    # (Cout, N*H*W) -> (Cout, N, H, W) -> (N, Cout, H, W).  Tiny (16 KiB here)
    # wrapper transpose; the kernel itself stays fully lane-dense.
    return jnp.transpose(out.reshape(Cout, N, H, W), (1, 0, 2, 3))


def _reference(x_nchw, w3, b3, w1, b1):
    """Pure-JAX reference (lax.conv) for correctness checking."""
    main = lax.conv_general_dilated(
        x_nchw, w3, window_strides=(1, 1), padding=((1, 1), (1, 1)),
        dimension_numbers=("NCHW", "OIHW", "NCHW"))
    main = main + b3[None, :, None, None]
    short = lax.conv_general_dilated(
        x_nchw, w1, window_strides=(1, 1), padding=((0, 0), (0, 0)),
        dimension_numbers=("NCHW", "OIHW", "NCHW"))
    short = short + b1[None, :, None, None]
    return jnp.maximum(main + short, 0.0)


if __name__ == "__main__":
    # Small shapes consistent with the module: NCHW input.
    N, Cin, Cout, H, W = 2, 4, 8, 16, 16

    key = jax.random.PRNGKey(0)
    kx, kw3, kb3, kw1, kb1 = jax.random.split(key, 5)

    x = jax.random.normal(kx, (N, Cin, H, W), dtype=jnp.float32)

    # Deterministic parameter init (uniform, PyTorch-conv-style fan-in bound).
    bound3 = 1.0 / (Cin * 3 * 3) ** 0.5
    w3 = jax.random.uniform(kw3, (Cout, Cin, 3, 3), jnp.float32, -bound3, bound3)
    b3 = jax.random.uniform(kb3, (Cout,), jnp.float32, -bound3, bound3)
    bound1 = 1.0 / (Cin * 1 * 1) ** 0.5
    w1 = jax.random.uniform(kw1, (Cout, Cin, 1, 1), jnp.float32, -bound1, bound1)
    b1 = jax.random.uniform(kb1, (Cout,), jnp.float32, -bound1, bound1)

    ref = _reference(x, w3, b3, w1, b1)

    # Default path: bf16 MXU operands, f32 accumulate/bias/ReLU (loose check).
    out_bf16 = jax.block_until_ready(residual_block(x, w3, b3, w1, b1))
    assert out_bf16.shape == (N, Cout, H, W)
    assert jnp.allclose(out_bf16, ref, atol=5e-2, rtol=5e-2), \
        "bf16 path mismatch vs reference"

    # Exact f32 path: verifies the shortcut/bias fusion is exact.
    out_f32 = jax.block_until_ready(
        residual_block(x, w3, b3, w1, b1, matmul_dtype=None))
    assert out_f32.shape == (N, Cout, H, W)
    assert jnp.allclose(out_f32, ref, atol=1e-4, rtol=1e-4), \
        "f32 path mismatch vs reference"

    print("KERNEL_OK")
</pallas_src>

<mosaic_0001>
module attributes {stable_mosaic.version = 11 : i64} {
  func.func @_resblock_kernel(%arg0: i32, %arg1: memref<36x512xbf16, #tpu.memory_space<vmem>>, %arg2: memref<8x36xbf16, #tpu.memory_space<vmem>>, %arg3: memref<8x1xf32, #tpu.memory_space<vmem>>, %arg4: memref<8x512xf32, #tpu.memory_space<vmem>>) attributes {dimension_semantics = [#tpu.dimension_semantics<parallel>], iteration_bounds = array<i64: 1>, scalar_prefetch = 0 : i64, scratch_operands = 0 : i64, tpu.core_type = #tpu.core_type<tc>, window_params = [{transform_indices = @transform_0, window_bounds = array<i64: 36, 512>}, {pipeline_mode = #tpu.pipeline_mode<synchronous>, transform_indices = @transform_1, window_bounds = array<i64: 8, 36>}, {pipeline_mode = #tpu.pipeline_mode<synchronous>, transform_indices = @transform_2, window_bounds = array<i64: 8, 1>}, {transform_indices = @transform_3, window_bounds = array<i64: 8, 512>}]} {
    %c0 = arith.constant 0 : index
    %c0_0 = arith.constant 0 : index
    %0 = vector.load %arg2[%c0, %c0_0] : memref<8x36xbf16, #tpu.memory_space<vmem>>, vector<8x36xbf16>
    %c0_1 = arith.constant 0 : index
    %c0_2 = arith.constant 0 : index
    %1 = vector.load %arg1[%c0_1, %c0_2] : memref<36x512xbf16, #tpu.memory_space<vmem>>, vector<36x512xbf16>
    %cst = arith.constant dense<0.000000e+00> : vector<8x512xf32>
    %2 = tpu.matmul %0, %1, %cst {dimension_numbers = #tpu.dot_dimension_numbers<[1], [0], [0], [1], [0, 0, 1, 1], [], []>} : vector<8x36xbf16>, vector<36x512xbf16>, vector<8x512xf32> -> vector<8x512xf32>
    %c0_3 = arith.constant 0 : index
    %c0_4 = arith.constant 0 : index
    %3 = vector.load %arg3[%c0_3, %c0_4] : memref<8x1xf32, #tpu.memory_space<vmem>>, vector<8x1xf32>
    %4 = vector.broadcast %3 : vector<8x1xf32> to vector<8x512xf32>
    %5 = arith.addf %2, %4 : vector<8x512xf32>
    %cst_5 = arith.constant 0.000000e+00 : f32
    %6 = vector.broadcast %cst_5 : f32 to vector<8x512xf32>
    %7 = arith.maximumf %5, %6 : vector<8x512xf32>
    %c0_6 = arith.constant 0 : index
    %c0_7 = arith.constant 0 : index
    %8 = vector.load %arg4[%c0_6, %c0_7] : memref<8x512xf32, #tpu.memory_space<vmem>>, vector<8x512xf32>
    tpu.vector_store %arg4[%c0_6, %c0_7], %7 {strides = array<i32>} : memref<8x512xf32, #tpu.memory_space<vmem>>, vector<8x512xf32>,
    return
  }
  func.func @transform_0(%arg0: i32) -> (i32, i32) {
    %c0_i32 = arith.constant 0 : i32
    %c0_i32_0 = arith.constant 0 : i32
    return %c0_i32, %arg0 : i32, i32
  }
  func.func @transform_1(%arg0: i32) -> (i32, i32) {
    %c0_i32 = arith.constant 0 : i32
    %c0_i32_0 = arith.constant 0 : i32
    %c0_i32_1 = arith.constant 0 : i32
    return %c0_i32, %c0_i32_0 : i32, i32
  }
  func.func @transform_2(%arg0: i32) -> (i32, i32) {
    %c0_i32 = arith.constant 0 : i32
    %c0_i32_0 = arith.constant 0 : i32
    %c0_i32_1 = arith.constant 0 : i32
    return %c0_i32, %c0_i32_0 : i32, i32
  }
  func.func @transform_3(%arg0: i32) -> (i32, i32) {
    %c0_i32 = arith.constant 0 : i32
    %c0_i32_0 = arith.constant 0 : i32
    return %c0_i32, %arg0 : i32, i32
  }
}

</mosaic_0001>

<llo_original>
// kernel: tpu_custom_call.1
$region0: #{tpu_custom_call.1}
  #allocation0 [shape = 'u32[]', space=smem, size = 0x4, offset = 0x4, fixed_abs, tag = 'smem constant byte address 0x4 - core index']
  #allocation1 [shape = 'u32[144,128]{1,0:T(1,128)}', space=vmem, size = 0x12000, scoped, tag = 'internal scratch']
  %s0 = inlined_call_operand.hbm [shape: bf16[36,512], index: 0, kind: input, shape index: {}]
  %s1 = inlined_call_operand.vmem [shape: bf16[8,36], index: 1, kind: input, shape index: {}]
  %s2 = inlined_call_operand.vmem [shape: f32[8,1], index: 2, kind: input, shape index: {}]
  %s3 = inlined_call_operand.hbm [shape: f32[8,512], index: 3, kind: output, shape index: {}]
  %s4 = sld [smem:[#allocation0]]
  $region26: #{tpu_custom_call.1} parent=0
    _
  %s6 = ssub.s32 1, %s4
  %s7 = scalar_select 0, %s6, %s4
  $region1: #{tpu_custom_call.1} parent=0
    #allocation2 [shape = 'u8[40960]{0}', space=vmem, size = 0xa000, scoped, tag = 'input window, operand 0, single buffered']
    #allocation3 [shape = 's32[1]{0}', space=sflag, size = 0x4, scoped, tag = 'scoped memory for tpu_custom_call.1']
    #allocation4 [shape = 's32[1]{0}', space=sflag, size = 0x4, scoped, tag = 'scoped memory for tpu_custom_call.1']
    #allocation5 [shape = 'u8[16384]{0}', space=vmem, size = 0x4000, scoped, tag = 'output window, operand 0, single buffered']
    %8 = vsyncpa [#allocation3], 0
    %9 = vsyncpa [#allocation4], 0
    // Predicated region
    $region2: #{tpu_custom_call.1} parent=1 // pred_check
      _
    $region3: #{tpu_custom_call.1} parent=1 // pred_check_branch
      %11 = sbr.rel (0) target = $region5
    $region4: #{tpu_custom_call.1} parent=1 // pred_region
      %s13 = ssub.s32 1280, 1280
      %14 = vsyncadd [#allocation3], %s13
      %s15 = sshll.u32 [#allocation2], 4
      %s16 = int_to_ptr.vmem [resolvable:$true] %s15
      %21 = dma.hbm_to_vmem [thread:$0]  %s0, 1280, %s16, [#allocation3], 256, 256, 16
    $region5: #{tpu_custom_call.1} parent=1 // pred_fallthru
      _
    // Predicated region
    $region6: #{tpu_custom_call.1} parent=1 // pred_check
      _
    $region7: #{tpu_custom_call.1} parent=1 // pred_check_branch
      %23 = sbr.rel (0) target = $region9
    $region8: #{tpu_custom_call.1} parent=1 // pred_region
      _
    $region9: #{tpu_custom_call.1} parent=1 // pred_fallthru
      _
    // Predicated region
    $region10: #{tpu_custom_call.1} parent=1 // pred_check
      _
    $region11: #{tpu_custom_call.1} parent=1 // pred_check_branch
      %25 = sbr.rel (0) target = $region13
    $region12: #{tpu_custom_call.1} parent=1 // pred_region
      _
    $region13: #{tpu_custom_call.1} parent=1 // pred_fallthru
      _
    // Predicated region
    $region14: #{tpu_custom_call.1} parent=1 // pred_check
      _
    $region15: #{tpu_custom_call.1} parent=1 // pred_check_branch
      %27 = sbr.rel (0) target = $region17
    $region16: #{tpu_custom_call.1} parent=1 // pred_region
      %28 = dma.done [#allocation3], 1280
    $region17: #{tpu_custom_call.1} parent=1 // pred_fallthru
      _
    %v30 = vld [vmem:[%s1] sm:$0xf]
    %v31 = vld [vmem:[#allocation2] sm:$0xff]
    %v32 = vld [vmem:[#allocation2 + $0x8] sm:$0xff]
    %v33 = vld [vmem:[#allocation2 + $0x10] sm:$0xff]
    %v34 = vld [vmem:[#allocation2 + $0x18] sm:$0xff]
    %v35 = vld [vmem:[#allocation2 + $0x20] sm:$0xff]
    %v36 = vld [vmem:[#allocation2 + $0x28] sm:$0xff]
    %v37 = vld [vmem:[#allocation2 + $0x30] sm:$0xff]
    %v38 = vld [vmem:[#allocation2 + $0x38] sm:$0xff]
    %v39 = vld [vmem:[#allocation2 + $0x40] sm:$0x33]
    %v40 = vld [vmem:[#allocation2 + $0x48] sm:$0x33]
    %v41 = vld [vmem:[%s2] sm:$0xff]
    %43 = vset.pattern.permute.xlu0 0
    %44 = vperm.xlu0 %43, %v41
    %v45 = vpop.permute.xlu0 %44
    %v57 = vunpack.c.l.b16 %v31
    %v58 = vunpack.c.h.b16 %v31
    %v59 = vunpack.c.l.b16 %v32
    %v60 = vunpack.c.h.b16 %v32
    %v61 = vunpack.c.l.b16 %v33
    %v62 = vunpack.c.h.b16 %v33
    %v63 = vunpack.c.l.b16 %v34
    %v64 = vunpack.c.h.b16 %v34
    %v65 = vunpack.c.l.b16 %v35
    %v66 = vunpack.c.h.b16 %v35
    %v67 = vunpack.c.l.b16 %v36
    %v68 = vunpack.c.h.b16 %v36
    %v69 = vunpack.c.l.b16 %v37
    %v70 = vunpack.c.h.b16 %v37
    %v71 = vunpack.c.l.b16 %v38
    %v72 = vunpack.c.h.b16 %v38
    %v73 = vunpack.c.l.b16 %v39
    %v74 = vunpack.c.h.b16 %v39
    %v75 = vunpack.c.l.b16 %v40
    %v76 = vunpack.c.h.b16 %v40
    %v77 = vpack.c.b16 %v61, %v57
    %v78 = vpack.c.b16 %v62, %v58
    %v79 = vpack.c.b16 %v63, %v59
    %v80 = vpack.c.b16 %v64, %v60
    %v81 = vpack.c.b16 %v69, %v65
    %v82 = vpack.c.b16 %v70, %v66
    %v83 = vpack.c.b16 %v71, %v67
    %v84 = vpack.c.b16 %v72, %v68
    %v85 = vpack.c.b16 %v73, %v73
    %v86 = vpack.c.b16 %v74, %v74
    %v87 = vpack.c.b16 %v75, %v75
    %v88 = vpack.c.b16 %v76, %v76
    %vm97 = vcmask 293888
    %v99 = vsel %vm97, %v30, 0
    %vm101 = vcmask 1041408
    %v103 = vsel %vm101, %v85, 0
    %v106 = vsel %vm101, %v86, 0
    %v109 = vsel %vm101, %v87, 0
    %v112 = vsel %vm101, %v88, 0
    %114 = vmatprep.subr.bf16.mxu0 %v78
    %115 = vmatpush1.bf16.msra.mxu0 %v77
    %116 = vmatprep.subr.bf16.mxu0 %v82
    %117 = vmatpush1.bf16.msra.mxu0 %v81
    %118 = vmatprep.subr.bf16.mxu0 %v106
    %119 = vmatpush1.bf16.msra.mxu0 %v103
    %120 = vmatprep.subr.bf16.mxu0 0
    %121 = vmatpush1.bf16.msra.mxu0 0
    %122 = vmatprep.subr.bf16.mxu0 0
    %123 = vmatpush1.bf16.msra.mxu0 0
    %124 = vmatprep.subr.bf16.mxu0 0
    %125 = vmatpush1.bf16.msra.mxu0 0
    %126 = vmatprep.subr.bf16.mxu0 0
    %127 = vmatpush1.bf16.msra.mxu0 0
    %128 = vmatprep.subr.bf16.mxu0 0
    %129 = vmatpush1.bf16.msra.mxu0 0
    %130 = vmatprep.subr.bf16.mxu0 0
    %131 = vmatpush1.bf16.msra.mxu0 0
    %132 = vmatprep.subr.bf16.mxu0 0
    %133 = vmatpush1.bf16.msra.mxu0 0
    %134 = vmatprep.subr.bf16.mxu0 0
    %135 = vmatpush1.bf16.msra.mxu0 0
    %136 = vmatprep.subr.bf16.mxu0 0
    %137 = vmatpush1.bf16.msra.mxu0 0
    %138 = vmatprep.subr.bf16.mxu0 0
    %139 = vmatpush1.bf16.msra.mxu0 0
    %140 = vmatprep.subr.bf16.mxu0 0
    %141 = vmatpush1.bf16.msra.mxu0 0
    %142 = vmatprep.subr.bf16.mxu0 0
    %143 = vmatpush1.bf16.msra.mxu0 0
    %144 = vmatprep.subr.bf16.mxu0 0
    %145 = vmatpush1.bf16.msra.mxu0 0
    %146 = vmatprep.mubr.bf16.mxu0 0
    %147 = vmatmul.mubr.bf16.gmra.mrb[0].mxu0 %v99
    %v148 = vpop.f32.mrb[0].mxu0
    %v149 = vadd.f32 %v45, %v148
    %v150 = vpop.f32.mrb[0].mxu0
    %v151 = vadd.f32 %v45, %v150
    %v152 = vpop.f32.mrb[0].mxu0
    %v153 = vpop.f32.mrb[0].mxu0
    %154 = vdwg.mxu0
    %155 = vmatprep.subr.bf16.mxu0 %v80
    %156 = vmatpush1.bf16.msra.mxu0 %v79
    %157 = vmatprep.subr.bf16.mxu0 %v84
    %158 = vmatpush1.bf16.msra.mxu0 %v83
    %159 = vmatprep.subr.bf16.mxu0 %v112
    %160 = vmatpush1.bf16.msra.mxu0 %v109
    %161 = vmatprep.subr.bf16.mxu0 0
    %162 = vmatpush1.bf16.msra.mxu0 0
    %163 = vmatprep.subr.bf16.mxu0 0
    %164 = vmatpush1.bf16.msra.mxu0 0
    %165 = vmatprep.subr.bf16.mxu0 0
    %166 = vmatpush1.bf16.msra.mxu0 0
    %167 = vmatprep.subr.bf16.mxu0 0
    %168 = vmatpush1.bf16.msra.mxu0 0
    %169 = vmatprep.subr.bf16.mxu0 0
    %170 = vmatpush1.bf16.msra.mxu0 0
    %171 = vmatprep.subr.bf16.mxu0 0
    %172 = vmatpush1.bf16.msra.mxu0 0
    %173 = vmatprep.subr.bf16.mxu0 0
    %174 = vmatpush1.bf16.msra.mxu0 0
    %175 = vmatprep.subr.bf16.mxu0 0
    %176 = vmatpush1.bf16.msra.mxu0 0
    %177 = vmatprep.subr.bf16.mxu0 0
    %178 = vmatpush1.bf16.msra.mxu0 0
    %179 = vmatprep.subr.bf16.mxu0 0
    %180 = vmatpush1.bf16.msra.mxu0 0
    %181 = vmatprep.subr.bf16.mxu0 0
    %182 = vmatpush1.bf16.msra.mxu0 0
    %183 = vmatprep.subr.bf16.mxu0 0
    %184 = vmatpush1.bf16.msra.mxu0 0
    %185 = vmatprep.subr.bf16.mxu0 0
    %186 = vmatpush1.bf16.msra.mxu0 0
    %187 = vmatprep.mubr.bf16.mxu0 0
    %188 = vmatmul.mubr.bf16.gmra.mrb[0].mxu0 %v99
    %v189 = vpop.f32.mrb[0].mxu0
    %v190 = vadd.f32 %v45, %v189
    %v191 = vpop.f32.mrb[0].mxu0
    %v192 = vadd.f32 %v45, %v191
    %v193 = vpop.f32.mrb[0].mxu0
    %v194 = vpop.f32.mrb[0].mxu0
    %195 = vdwg.mxu0
    %v196 = vmax.f32 %v149, 0.0
    %v197 = vmax.f32 %v151, 0.0
    %v198 = vmax.f32 %v190, 0.0
    %v199 = vmax.f32 %v192, 0.0
    %200 = vst [vmem:[#allocation5] sm:$0xff] %v196
    %201 = vst [vmem:[#allocation5 + $0x8] sm:$0xff] %v197
    %202 = vst [vmem:[#allocation5 + $0x10] sm:$0xff] %v198
    %203 = vst [vmem:[#allocation5 + $0x18] sm:$0xff] %v199
    // Predicated region
    $region18: #{tpu_custom_call.1} parent=1 // pred_check
      _
    $region19: #{tpu_custom_call.1} parent=1 // pred_check_branch
      %205 = sbr.rel (0) target = $region21
    $region20: #{tpu_custom_call.1} parent=1 // pred_region
      %s207 = ssub.s32 512, 512
      %208 = vsyncadd [#allocation4], %s207
      %s210 = sshll.u32 [#allocation5], 4
      %s211 = int_to_ptr.vmem [resolvable:$true] %s210
      %213 = dma.vmem_to_hbm [thread:$0]  %s211, 512, %s3, [#allocation4]
    $region21: #{tpu_custom_call.1} parent=1 // pred_fallthru
      _
    // Predicated region
    $region22: #{tpu_custom_call.1} parent=1 // pred_check
      _
    $region23: #{tpu_custom_call.1} parent=1 // pred_check_branch
      %215 = sbr.rel (0) target = $region25
    $region24: #{tpu_custom_call.1} parent=1 // pred_region
      %216 = dma.done [#allocation4], 512
    $region25: #{tpu_custom_call.1} parent=1 // pred_fallthru
      _
    %217 = vsyncpa [#allocation3], 1
    %218 = vsyncpa [#allocation4], 1

</llo_original>
